<compile_context>
chip_gen: v5e
topology: v5e:2x2
jax: 0.10.0
libtpu: 0.0.40
codegen_flags: <defaults>
</compile_context>

<pallas_src>
import jax
import jax.numpy as jnp
from jax.experimental import pallas as pl
from jax.experimental.pallas import tpu as pltpu

EPS = 1e-5


# --------------------------------------------------------------------------
# in-kernel helpers
# --------------------------------------------------------------------------
def _conv3x3_lane_dense(a, wbd_ref, c_in, p_out, h, w):
    """3x3 'same' convolution on a lane-dense image.

    a       : (h, w*c_in) f32, lane layout [w-major, c-minor]
    wbd_ref : (9, w*c_in, w*p_out) bf16 ref; tap t = kh*3+kw holds the
              block-diagonal matrix diag_w(w3x3[kh, kw]) built in the wrapper
    returns : (h, w*p_out) f32
    """
    # Zero padding via two in-register concatenations (no masked ring stores,
    # no padded scratch round trip, no iota masks).
    zc = jnp.zeros((h, c_in), jnp.float32)
    ap = jnp.concatenate([zc, a, zc], axis=1)                  # (h, (w+2)*c_in)
    zr = jnp.zeros((1, (w + 2) * c_in), jnp.float32)
    ap = jnp.concatenate([zr, ap, zr], axis=0)                 # (h+2, (w+2)*c_in)

    acc = jnp.zeros((h, w * p_out), jnp.float32)
    for kh in range(3):
        for kw in range(3):
            tap = ap[kh:kh + h, kw * c_in:kw * c_in + w * c_in]
            acc = acc + jnp.dot(tap.astype(jnp.bfloat16),      # bf16 MXU operands
                                wbd_ref[kh * 3 + kw],
                                preferred_element_type=jnp.float32)
    return acc


def _row_stats(y):
    """(h, wp) -> (2, wp): [sum; sum of squares] reduced over rows only.
    The W-group / batch reduction and the rsqrt fold happen once in the wrapper."""
    return jnp.concatenate([jnp.sum(y, axis=0, keepdims=True),
                            jnp.sum(y * y, axis=0, keepdims=True)], axis=0)


# --------------------------------------------------------------------------
# wrapper-side (XLA glue): weight repacking + BN statistic folding
# --------------------------------------------------------------------------
def _block_diag_3x3(w, width):
    """(3,3,c,p) conv weights -> (9, width*c, width*p) bf16 per-tap block diagonals."""
    c, p = w.shape[2], w.shape[3]
    wq = w.astype(jnp.bfloat16).reshape(9, c, p)
    eye = jnp.eye(width, dtype=jnp.bfloat16)
    bd = eye[None, :, None, :, None] * wq[:, None, :, None, :]   # (9, W, c, W, p)
    return bd.reshape(9, width * c, width * p)


def _block_diag_1x1(w, width):
    """(c,p) 1x1 conv weights -> (width*c, width*p) bf16 block diagonal."""
    c, p = w.shape
    wq = w.astype(jnp.bfloat16)
    eye = jnp.eye(width, dtype=jnp.bfloat16)
    bd = eye[:, None, :, None] * wq[None, :, None, :]            # (W, c, W, p)
    return bd.reshape(width * c, width * p)


def _fold_bn(st_partial, gamma, beta, count, w, p):
    """Fold per-image row-reduced [sum; sum_sq] partials (N, 2, w*p) into
    lane-dense (1, w*p) scale / shift (training-mode BN, biased variance)."""
    s = st_partial.reshape(-1, 2, w, p).sum(axis=(0, 2))          # (2, p)
    mean = s[0] / count
    var = s[1] / count - mean * mean                              # biased variance
    scale = gamma.reshape(p) * jax.lax.rsqrt(var + EPS)           # (p,)
    shift = beta.reshape(p) - mean * scale
    return (jnp.tile(scale, w).reshape(1, w * p),
            jnp.tile(shift, w).reshape(1, w * p))


# --------------------------------------------------------------------------
# BasicBlock forward
# --------------------------------------------------------------------------
def basic_block(x_nchw, params):
    """Pallas implementation of BasicBlock.forward (training-mode BN)."""
    x = jnp.transpose(x_nchw, (0, 2, 3, 1)).astype(jnp.float32)   # NHWC (glue)
    N, H, W, Cin = x.shape
    P = params["w1"].shape[-1]
    WC, WP = W * Cin, W * P
    x_ld = x.reshape(N, H, WC)                                    # lane-dense rows

    w1bd = _block_diag_3x3(params["w1"], W)        # (9, WC, WP) bf16
    w2bd = _block_diag_3x3(params["w2"], W)        # (9, WP, WP) bf16
    wsbd = _block_diag_1x1(params["ws"], W)        # (WC, WP)    bf16

    count = float(N * H * W)

    cparams = pltpu.CompilerParams(
        dimension_semantics=("parallel",),         # batch axis over both TCs (v7x)
        vmem_limit_bytes=64 * 1024 * 1024,
    )

    # ---- pass A: conv1 + 1x1 shortcut conv (raw) + BN row-partials ----
    def pass_a(x_ref, w1bd_ref, wsbd_ref, y1_ref, ysc_ref, st1_ref, sts_ref):
        xi = x_ref[...]                                           # (H, WC) f32
        y1 = _conv3x3_lane_dense(xi, w1bd_ref, Cin, P, H, W)      # (H, WP) f32
        ysc = jnp.dot(xi.astype(jnp.bfloat16), wsbd_ref[...],
                      preferred_element_type=jnp.float32)         # (H, WP) f32
        y1_ref[...] = y1
        ysc_ref[...] = ysc
        st1_ref[...] = _row_stats(y1)
        sts_ref[...] = _row_stats(ysc)

    y1, ysc, st1, sts = pl.pallas_call(
        pass_a,
        grid=(N,),
        in_specs=[
            pl.BlockSpec((None, H, WC), lambda n: (n, 0, 0)),
            pl.BlockSpec((9, WC, WP), lambda n: (0, 0, 0)),
            pl.BlockSpec((WC, WP), lambda n: (0, 0)),
        ],
        out_specs=(
            pl.BlockSpec((None, H, WP), lambda n: (n, 0, 0)),
            pl.BlockSpec((None, H, WP), lambda n: (n, 0, 0)),
            pl.BlockSpec((None, 2, WP), lambda n: (n, 0, 0)),
            pl.BlockSpec((None, 2, WP), lambda n: (n, 0, 0)),
        ),
        out_shape=(
            jax.ShapeDtypeStruct((N, H, WP), jnp.float32),
            jax.ShapeDtypeStruct((N, H, WP), jnp.float32),
            jax.ShapeDtypeStruct((N, 2, WP), jnp.float32),
            jax.ShapeDtypeStruct((N, 2, WP), jnp.float32),
        ),
        compiler_params=cparams,
    )(x_ld, w1bd, wsbd)

    # BN1 fold is tiny (2, P) work -> do it once here instead of N times in-kernel.
    sc1, sh1 = _fold_bn(st1, params["g1"], params["b1"], count, W, P)

    # ---- pass B: bn1 (folded, f32) + relu + conv2 (raw) + BN2 row-partials ----
    def pass_b(y1_ref, sc1_ref, sh1_ref, w2bd_ref, y2_ref, st2_ref):
        h1 = jnp.maximum(y1_ref[...] * sc1_ref[...] + sh1_ref[...], 0.0)
        y2 = _conv3x3_lane_dense(h1, w2bd_ref, P, P, H, W)
        y2_ref[...] = y2
        st2_ref[...] = _row_stats(y2)

    y2, st2 = pl.pallas_call(
        pass_b,
        grid=(N,),
        in_specs=[
            pl.BlockSpec((None, H, WP), lambda n: (n, 0, 0)),
            pl.BlockSpec((1, WP), lambda n: (0, 0)),
            pl.BlockSpec((1, WP), lambda n: (0, 0)),
            pl.BlockSpec((9, WP, WP), lambda n: (0, 0, 0)),
        ],
        out_specs=(
            pl.BlockSpec((None, H, WP), lambda n: (n, 0, 0)),
            pl.BlockSpec((None, 2, WP), lambda n: (n, 0, 0)),
        ),
        out_shape=(
            jax.ShapeDtypeStruct((N, H, WP), jnp.float32),
            jax.ShapeDtypeStruct((N, 2, WP), jnp.float32),
        ),
        compiler_params=cparams,
    )(y1, sc1, sh1, w2bd)

    sc2, sh2 = _fold_bn(st2, params["g2"], params["b2"], count, W, P)
    scs, shs = _fold_bn(sts, params["gs"], params["bs"], count, W, P)

    # ---- pass C: bn2 + bn_s + add + relu, all lane-dense elementwise ----
    def pass_c(y2_ref, ysc_ref, sc2_ref, sh2_ref, scs_ref, shs_ref, out_ref):
        out_ref[...] = jnp.maximum(
            y2_ref[...] * sc2_ref[...] + sh2_ref[...]
            + ysc_ref[...] * scs_ref[...] + shs_ref[...], 0.0)

    out_ld = pl.pallas_call(
        pass_c,
        grid=(N,),
        in_specs=[
            pl.BlockSpec((None, H, WP), lambda n: (n, 0, 0)),
            pl.BlockSpec((None, H, WP), lambda n: (n, 0, 0)),
            pl.BlockSpec((1, WP), lambda n: (0, 0)),
            pl.BlockSpec((1, WP), lambda n: (0, 0)),
            pl.BlockSpec((1, WP), lambda n: (0, 0)),
            pl.BlockSpec((1, WP), lambda n: (0, 0)),
        ],
        out_specs=pl.BlockSpec((None, H, WP), lambda n: (n, 0, 0)),
        out_shape=jax.ShapeDtypeStruct((N, H, WP), jnp.float32),
        compiler_params=cparams,
    )(y2, ysc, sc2, sh2, scs, shs)

    out = out_ld.reshape(N, H, W, P)               # metadata split of W*P lanes
    return jnp.transpose(out, (0, 3, 1, 2))        # back to NCHW


# --------------------------------------------------------------------------
# pure-JAX reference (same bf16 matmul operands, f32 accumulation / BN)
# --------------------------------------------------------------------------
def reference_forward(x_nchw, params):
    x = jnp.transpose(x_nchw, (0, 2, 3, 1)).astype(jnp.float32)

    def conv(inp, w, pad):
        return jax.lax.conv_general_dilated(
            inp.astype(jnp.bfloat16), w.astype(jnp.bfloat16),
            window_strides=(1, 1), padding=[(pad, pad), (pad, pad)],
            dimension_numbers=("NHWC", "HWIO", "NHWC"),
            preferred_element_type=jnp.float32)

    def bn(y, g, b):
        mu = jnp.mean(y, axis=(0, 1, 2), keepdims=True)
        var = jnp.mean((y - mu) ** 2, axis=(0, 1, 2), keepdims=True)
        return ((y - mu) * jax.lax.rsqrt(var + EPS) * g.reshape(1, 1, 1, -1)
                + b.reshape(1, 1, 1, -1))

    h = jax.nn.relu(bn(conv(x, params["w1"], 1), params["g1"], params["b1"]))
    h = bn(conv(h, params["w2"], 1), params["g2"], params["b2"])
    s = bn(conv(x, params["ws"][None, None], 0), params["gs"], params["bs"])
    return jnp.transpose(jax.nn.relu(h + s), (0, 3, 1, 2))


if __name__ == "__main__":
    # small shapes consistent with the module: in_planes=4, planes=8, stride=1
    N, Cin, Hs, Ws, P = 2, 4, 16, 16, 8

    key = jax.random.PRNGKey(0)
    ks = jax.random.split(key, 8)

    params = {
        "w1": 0.2 * jax.random.normal(ks[0], (3, 3, Cin, P), jnp.float32),
        "w2": 0.2 * jax.random.normal(ks[1], (3, 3, P, P), jnp.float32),
        "ws": 0.3 * jax.random.normal(ks[2], (Cin, P), jnp.float32),
        "g1": 1.0 + 0.1 * jax.random.normal(ks[3], (1, P), jnp.float32),
        "b1": 0.1 * jax.random.normal(ks[4], (1, P), jnp.float32),
        "g2": 1.0 + 0.1 * jax.random.normal(ks[5], (1, P), jnp.float32),
        "b2": 0.1 * jax.random.normal(ks[6], (1, P), jnp.float32),
        "gs": jnp.ones((1, P), jnp.float32),
        "bs": jnp.zeros((1, P), jnp.float32),
    }

    x = jax.random.normal(ks[7], (N, Cin, Hs, Ws), jnp.float32)  # NCHW, like PyTorch

    out = jax.block_until_ready(basic_block(x, params))
    ref = jax.block_until_ready(reference_forward(x, params))

    assert out.shape == (N, P, Hs, Ws), out.shape
    assert jnp.allclose(out, ref, atol=3e-3, rtol=3e-3), \
        f"max abs err {jnp.max(jnp.abs(out - ref))}"

    print("KERNEL_OK")
</pallas_src>

<mosaic_0001>
module attributes {stable_mosaic.version = 11 : i64} {
  func.func @pass_a(%arg0: i32, %arg1: memref<1x16x64xf32, #tpu.memory_space<vmem>>, %arg2: memref<9x64x128xbf16, #tpu.memory_space<vmem>>, %arg3: memref<64x128xbf16, #tpu.memory_space<vmem>>, %arg4: memref<1x16x128xf32, #tpu.memory_space<vmem>>, %arg5: memref<1x16x128xf32, #tpu.memory_space<vmem>>, %arg6: memref<1x2x128xf32, #tpu.memory_space<vmem>>, %arg7: memref<1x2x128xf32, #tpu.memory_space<vmem>>) attributes {dimension_semantics = [#tpu.dimension_semantics<parallel>], iteration_bounds = array<i64: 2>, scalar_prefetch = 0 : i64, scratch_operands = 0 : i64, tpu.core_type = #tpu.core_type<tc>, window_params = [{transform_indices = @transform_0, window_bounds = array<i64: 1, 16, 64>}, {pipeline_mode = #tpu.pipeline_mode<synchronous>, transform_indices = @transform_1, window_bounds = array<i64: 9, 64, 128>}, {pipeline_mode = #tpu.pipeline_mode<synchronous>, transform_indices = @transform_2, window_bounds = array<i64: 64, 128>}, {transform_indices = @transform_3, window_bounds = array<i64: 1, 16, 128>}, {transform_indices = @transform_4, window_bounds = array<i64: 1, 16, 128>}, {transform_indices = @transform_5, window_bounds = array<i64: 1, 2, 128>}, {transform_indices = @transform_6, window_bounds = array<i64: 1, 2, 128>}]} {
    %c0 = arith.constant 0 : index
    %c0_0 = arith.constant 0 : index
    %c0_1 = arith.constant 0 : index
    %0 = vector.load %arg1[%c0, %c0_0, %c0_1] : memref<1x16x64xf32, #tpu.memory_space<vmem>>, vector<1x16x64xf32>
    %1 = vector.shape_cast %0 : vector<1x16x64xf32> to vector<16x64xf32>
    %cst = arith.constant 0.000000e+00 : f32
    %2 = vector.broadcast %cst : f32 to vector<16x4xf32>
    %3 = tpu.concatenate %2, %1, %2 in 1 : vector<16x4xf32>, vector<16x64xf32>, vector<16x4xf32> -> vector<16x72xf32>
    %cst_2 = arith.constant 0.000000e+00 : f32
    %4 = vector.broadcast %cst_2 : f32 to vector<1x72xf32>
    %5 = tpu.concatenate %4, %3, %4 in 0 : vector<1x72xf32>, vector<16x72xf32>, vector<1x72xf32> -> vector<18x72xf32>
    %cst_3 = arith.constant 0.000000e+00 : f32
    %6 = vector.broadcast %cst_3 : f32 to vector<16x128xf32>
    %7 = vector.extract_strided_slice %5 {offsets = [0, 0], sizes = [16, 64], strides = [1, 1]} : vector<18x72xf32> to vector<16x64xf32>
    %8 = arith.truncf %7 : vector<16x64xf32> to vector<16x64xbf16>
    %c0_4 = arith.constant 0 : index
    %c0_5 = arith.constant 0 : index
    %c0_6 = arith.constant 0 : index
    %9 = vector.load %arg2[%c0_4, %c0_5, %c0_6] : memref<9x64x128xbf16, #tpu.memory_space<vmem>>, vector<1x64x128xbf16>
    %10 = vector.shape_cast %9 : vector<1x64x128xbf16> to vector<64x128xbf16>
    %cst_7 = arith.constant dense<0.000000e+00> : vector<16x128xf32>
    %11 = tpu.matmul %8, %10, %cst_7 {dimension_numbers = #tpu.dot_dimension_numbers<[1], [0], [0], [1], [0, 0, 1, 1], [], []>} : vector<16x64xbf16>, vector<64x128xbf16>, vector<16x128xf32> -> vector<16x128xf32>
    %12 = arith.addf %6, %11 : vector<16x128xf32>
    %13 = vector.extract_strided_slice %5 {offsets = [0, 4], sizes = [16, 64], strides = [1, 1]} : vector<18x72xf32> to vector<16x64xf32>
    %14 = arith.truncf %13 : vector<16x64xf32> to vector<16x64xbf16>
    %c1 = arith.constant 1 : index
    %c0_8 = arith.constant 0 : index
    %c0_9 = arith.constant 0 : index
    %15 = vector.load %arg2[%c1, %c0_8, %c0_9] : memref<9x64x128xbf16, #tpu.memory_space<vmem>>, vector<1x64x128xbf16>
    %16 = vector.shape_cast %15 : vector<1x64x128xbf16> to vector<64x128xbf16>
    %cst_10 = arith.constant dense<0.000000e+00> : vector<16x128xf32>
    %17 = tpu.matmul %14, %16, %cst_10 {dimension_numbers = #tpu.dot_dimension_numbers<[1], [0], [0], [1], [0, 0, 1, 1], [], []>} : vector<16x64xbf16>, vector<64x128xbf16>, vector<16x128xf32> -> vector<16x128xf32>
    %18 = arith.addf %12, %17 : vector<16x128xf32>
    %19 = vector.extract_strided_slice %5 {offsets = [0, 8], sizes = [16, 64], strides = [1, 1]} : vector<18x72xf32> to vector<16x64xf32>
    %20 = arith.truncf %19 : vector<16x64xf32> to vector<16x64xbf16>
    %c2 = arith.constant 2 : index
    %c0_11 = arith.constant 0 : index
    %c0_12 = arith.constant 0 : index
    %21 = vector.load %arg2[%c2, %c0_11, %c0_12] : memref<9x64x128xbf16, #tpu.memory_space<vmem>>, vector<1x64x128xbf16>
    %22 = vector.shape_cast %21 : vector<1x64x128xbf16> to vector<64x128xbf16>
    %cst_13 = arith.constant dense<0.000000e+00> : vector<16x128xf32>
    %23 = tpu.matmul %20, %22, %cst_13 {dimension_numbers = #tpu.dot_dimension_numbers<[1], [0], [0], [1], [0, 0, 1, 1], [], []>} : vector<16x64xbf16>, vector<64x128xbf16>, vector<16x128xf32> -> vector<16x128xf32>
    %24 = arith.addf %18, %23 : vector<16x128xf32>
    %25 = vector.extract_strided_slice %5 {offsets = [1, 0], sizes = [16, 64], strides = [1, 1]} : vector<18x72xf32> to vector<16x64xf32>
    %26 = arith.truncf %25 : vector<16x64xf32> to vector<16x64xbf16>
    %c3 = arith.constant 3 : index
    %c0_14 = arith.constant 0 : index
    %c0_15 = arith.constant 0 : index
    %27 = vector.load %arg2[%c3, %c0_14, %c0_15] : memref<9x64x128xbf16, #tpu.memory_space<vmem>>, vector<1x64x128xbf16>
    %28 = vector.shape_cast %27 : vector<1x64x128xbf16> to vector<64x128xbf16>
    %cst_16 = arith.constant dense<0.000000e+00> : vector<16x128xf32>
    %29 = tpu.matmul %26, %28, %cst_16 {dimension_numbers = #tpu.dot_dimension_numbers<[1], [0], [0], [1], [0, 0, 1, 1], [], []>} : vector<16x64xbf16>, vector<64x128xbf16>, vector<16x128xf32> -> vector<16x128xf32>
    %30 = arith.addf %24, %29 : vector<16x128xf32>
    %31 = vector.extract_strided_slice %5 {offsets = [1, 4], sizes = [16, 64], strides = [1, 1]} : vector<18x72xf32> to vector<16x64xf32>
    %32 = arith.truncf %31 : vector<16x64xf32> to vector<16x64xbf16>
    %c4 = arith.constant 4 : index
    %c0_17 = arith.constant 0 : index
    %c0_18 = arith.constant 0 : index
    %33 = vector.load %arg2[%c4, %c0_17, %c0_18] : memref<9x64x128xbf16, #tpu.memory_space<vmem>>, vector<1x64x128xbf16>
    %34 = vector.shape_cast %33 : vector<1x64x128xbf16> to vector<64x128xbf16>
    %cst_19 = arith.constant dense<0.000000e+00> : vector<16x128xf32>
    %35 = tpu.matmul %32, %34, %cst_19 {dimension_numbers = #tpu.dot_dimension_numbers<[1], [0], [0], [1], [0, 0, 1, 1], [], []>} : vector<16x64xbf16>, vector<64x128xbf16>, vector<16x128xf32> -> vector<16x128xf32>
    %36 = arith.addf %30, %35 : vector<16x128xf32>
    %37 = vector.extract_strided_slice %5 {offsets = [1, 8], sizes = [16, 64], strides = [1, 1]} : vector<18x72xf32> to vector<16x64xf32>
    %38 = arith.truncf %37 : vector<16x64xf32> to vector<16x64xbf16>
    %c5 = arith.constant 5 : index
    %c0_20 = arith.constant 0 : index
    %c0_21 = arith.constant 0 : index
    %39 = vector.load %arg2[%c5, %c0_20, %c0_21] : memref<9x64x128xbf16, #tpu.memory_space<vmem>>, vector<1x64x128xbf16>
    %40 = vector.shape_cast %39 : vector<1x64x128xbf16> to vector<64x128xbf16>
    %cst_22 = arith.constant dense<0.000000e+00> : vector<16x128xf32>
    %41 = tpu.matmul %38, %40, %cst_22 {dimension_numbers = #tpu.dot_dimension_numbers<[1], [0], [0], [1], [0, 0, 1, 1], [], []>} : vector<16x64xbf16>, vector<64x128xbf16>, vector<16x128xf32> -> vector<16x128xf32>
    %42 = arith.addf %36, %41 : vector<16x128xf32>
    %43 = vector.extract_strided_slice %5 {offsets = [2, 0], sizes = [16, 64], strides = [1, 1]} : vector<18x72xf32> to vector<16x64xf32>
    %44 = arith.truncf %43 : vector<16x64xf32> to vector<16x64xbf16>
    %c6 = arith.constant 6 : index
    %c0_23 = arith.constant 0 : index
    %c0_24 = arith.constant 0 : index
    %45 = vector.load %arg2[%c6, %c0_23, %c0_24] : memref<9x64x128xbf16, #tpu.memory_space<vmem>>, vector<1x64x128xbf16>
    %46 = vector.shape_cast %45 : vector<1x64x128xbf16> to vector<64x128xbf16>
    %cst_25 = arith.constant dense<0.000000e+00> : vector<16x128xf32>
    %47 = tpu.matmul %44, %46, %cst_25 {dimension_numbers = #tpu.dot_dimension_numbers<[1], [0], [0], [1], [0, 0, 1, 1], [], []>} : vector<16x64xbf16>, vector<64x128xbf16>, vector<16x128xf32> -> vector<16x128xf32>
    %48 = arith.addf %42, %47 : vector<16x128xf32>
    %49 = vector.extract_strided_slice %5 {offsets = [2, 4], sizes = [16, 64], strides = [1, 1]} : vector<18x72xf32> to vector<16x64xf32>
    %50 = arith.truncf %49 : vector<16x64xf32> to vector<16x64xbf16>
    %c7 = arith.constant 7 : index
    %c0_26 = arith.constant 0 : index
    %c0_27 = arith.constant 0 : index
    %51 = vector.load %arg2[%c7, %c0_26, %c0_27] : memref<9x64x128xbf16, #tpu.memory_space<vmem>>, vector<1x64x128xbf16>
    %52 = vector.shape_cast %51 : vector<1x64x128xbf16> to vector<64x128xbf16>
    %cst_28 = arith.constant dense<0.000000e+00> : vector<16x128xf32>
    %53 = tpu.matmul %50, %52, %cst_28 {dimension_numbers = #tpu.dot_dimension_numbers<[1], [0], [0], [1], [0, 0, 1, 1], [], []>} : vector<16x64xbf16>, vector<64x128xbf16>, vector<16x128xf32> -> vector<16x128xf32>
    %54 = arith.addf %48, %53 : vector<16x128xf32>
    %55 = vector.extract_strided_slice %5 {offsets = [2, 8], sizes = [16, 64], strides = [1, 1]} : vector<18x72xf32> to vector<16x64xf32>
    %56 = arith.truncf %55 : vector<16x64xf32> to vector<16x64xbf16>
    %c8 = arith.constant 8 : index
    %c0_29 = arith.constant 0 : index
    %c0_30 = arith.constant 0 : index
    %57 = vector.load %arg2[%c8, %c0_29, %c0_30] : memref<9x64x128xbf16, #tpu.memory_space<vmem>>, vector<1x64x128xbf16>
    %58 = vector.shape_cast %57 : vector<1x64x128xbf16> to vector<64x128xbf16>
    %cst_31 = arith.constant dense<0.000000e+00> : vector<16x128xf32>
    %59 = tpu.matmul %56, %58, %cst_31 {dimension_numbers = #tpu.dot_dimension_numbers<[1], [0], [0], [1], [0, 0, 1, 1], [], []>} : vector<16x64xbf16>, vector<64x128xbf16>, vector<16x128xf32> -> vector<16x128xf32>
    %60 = arith.addf %54, %59 : vector<16x128xf32>
    %61 = arith.truncf %1 : vector<16x64xf32> to vector<16x64xbf16>
    %c0_32 = arith.constant 0 : index
    %c0_33 = arith.constant 0 : index
    %62 = vector.load %arg3[%c0_32, %c0_33] : memref<64x128xbf16, #tpu.memory_space<vmem>>, vector<64x128xbf16>
    %cst_34 = arith.constant dense<0.000000e+00> : vector<16x128xf32>
    %63 = tpu.matmul %61, %62, %cst_34 {dimension_numbers = #tpu.dot_dimension_numbers<[1], [0], [0], [1], [0, 0, 1, 1], [], []>} : vector<16x64xbf16>, vector<64x128xbf16>, vector<16x128xf32> -> vector<16x128xf32>
    %c0_35 = arith.constant 0 : index
    %c0_36 = arith.constant 0 : index
    %c0_37 = arith.constant 0 : index
    %64 = vector.load %arg4[%c0_35, %c0_36, %c0_37] : memref<1x16x128xf32, #tpu.memory_space<vmem>>, vector<1x16x128xf32>
    %65 = vector.shape_cast %64 : vector<1x16x128xf32> to vector<16x128xf32>
    %66 = vector.shape_cast %60 : vector<16x128xf32> to vector<1x16x128xf32>
    tpu.vector_store %arg4[%c0_35, %c0_36, %c0_37], %66 {strides = array<i32>} : memref<1x16x128xf32, #tpu.memory_space<vmem>>, vector<1x16x128xf32>,
    %c0_38 = arith.constant 0 : index
    %c0_39 = arith.constant 0 : index
    %c0_40 = arith.constant 0 : index
    %67 = vector.load %arg5[%c0_38, %c0_39, %c0_40] : memref<1x16x128xf32, #tpu.memory_space<vmem>>, vector<1x16x128xf32>
    %68 = vector.shape_cast %67 : vector<1x16x128xf32> to vector<16x128xf32>
    %69 = vector.shape_cast %63 : vector<16x128xf32> to vector<1x16x128xf32>
    tpu.vector_store %arg5[%c0_38, %c0_39, %c0_40], %69 {strides = array<i32>} : memref<1x16x128xf32, #tpu.memory_space<vmem>>, vector<1x16x128xf32>,
    %cst_41 = arith.constant dense<0.000000e+00> : vector<128xf32>
    %70 = vector.multi_reduction <add>, %60, %cst_41 [0] : vector<16x128xf32> to vector<128xf32>
    %71 = vector.shape_cast %70 : vector<128xf32> to vector<1x128xf32>
    %72 = arith.mulf %60, %60 : vector<16x128xf32>
    %cst_42 = arith.constant dense<0.000000e+00> : vector<128xf32>
    %73 = vector.multi_reduction <add>, %72, %cst_42 [0] : vector<16x128xf32> to vector<128xf32>
    %74 = vector.shape_cast %73 : vector<128xf32> to vector<1x128xf32>
    %75 = tpu.concatenate %71, %74 in 0 : vector<1x128xf32>, vector<1x128xf32> -> vector<2x128xf32>
    %c0_43 = arith.constant 0 : index
    %c0_44 = arith.constant 0 : index
    %c0_45 = arith.constant 0 : index
    %76 = vector.load %arg6[%c0_43, %c0_44, %c0_45] : memref<1x2x128xf32, #tpu.memory_space<vmem>>, vector<1x2x128xf32>
    %77 = vector.shape_cast %76 : vector<1x2x128xf32> to vector<2x128xf32>
    %78 = vector.shape_cast %75 : vector<2x128xf32> to vector<1x2x128xf32>
    tpu.vector_store %arg6[%c0_43, %c0_44, %c0_45], %78 {strides = array<i32>} : memref<1x2x128xf32, #tpu.memory_space<vmem>>, vector<1x2x128xf32>,
    %cst_46 = arith.constant dense<0.000000e+00> : vector<128xf32>
    %79 = vector.multi_reduction <add>, %63, %cst_46 [0] : vector<16x128xf32> to vector<128xf32>
    %80 = vector.shape_cast %79 : vector<128xf32> to vector<1x128xf32>
    %81 = arith.mulf %63, %63 : vector<16x128xf32>
    %cst_47 = arith.constant dense<0.000000e+00> : vector<128xf32>
    %82 = vector.multi_reduction <add>, %81, %cst_47 [0] : vector<16x128xf32> to vector<128xf32>
    %83 = vector.shape_cast %82 : vector<128xf32> to vector<1x128xf32>
    %84 = tpu.concatenate %80, %83 in 0 : vector<1x128xf32>, vector<1x128xf32> -> vector<2x128xf32>
    %c0_48 = arith.constant 0 : index
    %c0_49 = arith.constant 0 : index
    %c0_50 = arith.constant 0 : index
    %85 = vector.load %arg7[%c0_48, %c0_49, %c0_50] : memref<1x2x128xf32, #tpu.memory_space<vmem>>, vector<1x2x128xf32>
    %86 = vector.shape_cast %85 : vector<1x2x128xf32> to vector<2x128xf32>
    %87 = vector.shape_cast %84 : vector<2x128xf32> to vector<1x2x128xf32>
    tpu.vector_store %arg7[%c0_48, %c0_49, %c0_50], %87 {strides = array<i32>} : memref<1x2x128xf32, #tpu.memory_space<vmem>>, vector<1x2x128xf32>,
    return
  }
  func.func @transform_0(%arg0: i32) -> (i32, i32, i32) {
    %c0_i32 = arith.constant 0 : i32
    %c0_i32_0 = arith.constant 0 : i32
    %c0_i32_1 = arith.constant 0 : i32
    return %arg0, %c0_i32, %c0_i32_0 : i32, i32, i32
  }
  func.func @transform_1(%arg0: i32) -> (i32, i32, i32) {
    %c0_i32 = arith.constant 0 : i32
    %c0_i32_0 = arith.constant 0 : i32
    %c0_i32_1 = arith.constant 0 : i32
    %c0_i32_2 = arith.constant 0 : i32
    return %c0_i32, %c0_i32_0, %c0_i32_1 : i32, i32, i32
  }
  func.func @transform_2(%arg0: i32) -> (i32, i32) {
    %c0_i32 = arith.constant 0 : i32
    %c0_i32_0 = arith.constant 0 : i32
    %c0_i32_1 = arith.constant 0 : i32
    return %c0_i32, %c0_i32_0 : i32, i32
  }
  func.func @transform_3(%arg0: i32) -> (i32, i32, i32) {
    %c0_i32 = arith.constant 0 : i32
    %c0_i32_0 = arith.constant 0 : i32
    %c0_i32_1 = arith.constant 0 : i32
    return %arg0, %c0_i32, %c0_i32_0 : i32, i32, i32
  }
  func.func @transform_4(%arg0: i32) -> (i32, i32, i32) {
    %c0_i32 = arith.constant 0 : i32
    %c0_i32_0 = arith.constant 0 : i32
    %c0_i32_1 = arith.constant 0 : i32
    return %arg0, %c0_i32, %c0_i32_0 : i32, i32, i32
  }
  func.func @transform_5(%arg0: i32) -> (i32, i32, i32) {
    %c0_i32 = arith.constant 0 : i32
    %c0_i32_0 = arith.constant 0 : i32
    %c0_i32_1 = arith.constant 0 : i32
    return %arg0, %c0_i32, %c0_i32_0 : i32, i32, i32
  }
  func.func @transform_6(%arg0: i32) -> (i32, i32, i32) {
    %c0_i32 = arith.constant 0 : i32
    %c0_i32_0 = arith.constant 0 : i32
    %c0_i32_1 = arith.constant 0 : i32
    return %arg0, %c0_i32, %c0_i32_0 : i32, i32, i32
  }
}

</mosaic_0001>

<llo_original>
// kernel: tpu_custom_call.1
$region0: #{tpu_custom_call.1}
  #allocation0 [shape = 'u32[]', space=smem, size = 0x4, offset = 0x4, fixed_abs, tag = 'smem constant byte address 0x4 - core index']
  #allocation1 [shape = 'u32[72,128]{1,0:T(1,128)}', space=vmem, size = 0x9000, scoped, tag = 'internal scratch']
  %s0 = inlined_call_operand.hbm [shape: f32[2,16,64], index: 0, kind: input, shape index: {}]
  %s1 = inlined_call_operand.hbm [shape: bf16[9,64,128], index: 1, kind: input, shape index: {}]
  %s2 = inlined_call_operand.hbm [shape: bf16[64,128], index: 2, kind: input, shape index: {}]
  %s3 = inlined_call_operand.hbm [shape: f32[2,16,128], index: 3, kind: output, shape index: {0}]
  %s4 = inlined_call_operand.hbm [shape: f32[2,16,128], index: 4, kind: output, shape index: {1}]
  %s5 = inlined_call_operand.hbm [shape: f32[2,2,128], index: 5, kind: output, shape index: {2}]
  %s6 = inlined_call_operand.hbm [shape: f32[2,2,128], index: 6, kind: output, shape index: {3}]
  %7 = xla_tuple %s3, %s4, %s5, %s6
  %s8 = sld [smem:[#allocation0]]
  $region81: #{tpu_custom_call.1} parent=0
    _
  %s10 = ssub.s32 1, %s8
  %s11 = scalar_select 0, %s10, %s8
  $region1: #{tpu_custom_call.1} parent=0
    #allocation2 [shape = 'u8[16384]{0}', space=vmem, size = 0x4000, scoped, tag = 'input window, operand 0']
    #allocation3 [shape = 's32[2]{0}', space=sflag, size = 0x8, scoped, tag = 'scoped memory for tpu_custom_call.1']
    #allocation4 [shape = 's32[2]{0}', space=sflag, size = 0x8, scoped, tag = 'scoped memory for tpu_custom_call.1']
    #allocation5 [shape = 'u8[147456]{0}', space=vmem, size = 0x24000, scoped, tag = 'input window, operand 1, single buffered']
    #allocation6 [shape = 's32[1]{0}', space=sflag, size = 0x4, scoped, tag = 'scoped memory for tpu_custom_call.1']
    #allocation7 [shape = 'u8[16384]{0}', space=vmem, size = 0x4000, scoped, tag = 'input window, operand 2, single buffered']
    #allocation8 [shape = 'u8[16384]{0}', space=vmem, size = 0x4000, scoped, tag = 'output window, operand 0']
    #allocation9 [shape = 'u8[16384]{0}', space=vmem, size = 0x4000, scoped, tag = 'output window, operand 1']
    #allocation10 [shape = 's32[2]{0}', space=sflag, size = 0x8, scoped, tag = 'scoped memory for tpu_custom_call.1']
    #allocation11 [shape = 'u8[2048]{0}', space=vmem, size = 0x800, scoped, tag = 'output window, operand 2']
    #allocation12 [shape = 'u8[2048]{0}', space=vmem, size = 0x800, scoped, tag = 'output window, operand 3']
    #allocation13 [shape = 's32[2]{0}', space=sflag, size = 0x8, scoped, tag = 'scoped memory for tpu_custom_call.1']
    %12 = vsyncpa [#allocation3], 0
    %s13 = scalar_lea.sflag [#allocation3], 1
    %14 = vsyncpa %s13, 0
    %15 = vsyncpa [#allocation6], 0
    %16 = vsyncpa [#allocation4], 0
    %s17 = scalar_lea.sflag [#allocation4], 1
    %18 = vsyncpa %s17, 0
    %19 = vsyncpa [#allocation10], 0
    %s20 = scalar_lea.sflag [#allocation10], 1
    %21 = vsyncpa %s20, 0
    %22 = vsyncpa [#allocation13], 0
    %s23 = scalar_lea.sflag [#allocation13], 1
    %24 = vsyncpa %s23, 0
    loop: start=0, step=1, limit=4
    $region2: #{tpu_custom_call.1} parent=1 // loop_pre_header
      _
    $region3: #{tpu_custom_call.1} parent=1 // loop_header
      %s26 = sphi 0, %s30
      %p27 = scmp.ge.s32.totalorder %s26, 4
      %s36 = sphi 0, %s38
      %s39 = sphi 0, %s36
      %s40 = sphi 0, %s39
      %s56 = sphi 0, %s40
      %s60 = sphi 0, %s60
      %s62 = sphi 0, %s60
      %s63 = sphi 0, %s62
      %s77 = sphi 0, %s63
      %s81 = sphi 0, %s81
      %s83 = sphi 0, %s81
      %s84 = sphi 0, %s83
      %s98 = sphi 0, %s84
      %s104 = sphi 0, %s106
      %s107 = sphi 0, %s104
      %s108 = sphi 0, %s107
      %s124 = sphi 0, %s108
      %s130 = sphi 0, %s132
      %s133 = sphi 0, %s130
      %s134 = sphi 0, %s133
      %s150 = sphi 0, %s134
      %s156 = sphi 0, %s158
      %s159 = sphi 0, %s156
      %s160 = sphi 0, %s159
      %s176 = sphi 0, %s160
      %s182 = sphi 0, %s184
      %s185 = sphi 0, %s182
      %s186 = sphi 0, %s185
      %s202 = sphi 0, %s186
    $region4: #{tpu_custom_call.1} parent=1 // loop_header_branch
      %29 = sbr.rel (%p27) target = $region8
    $region5: #{tpu_custom_call.1} parent=1 // loop_body
      %s31 = ssub.s32 %s26, 1
      %s32 = ssub.s32 %s26, 2
      %s33 = sadd.s32 %s26, 1
      %s34 = ssub.s32 %s26, %s33
      %p35 = scmp.eq.s32.totalorder %s34, 0
      %s37 = sadd.s32 %s36, 1
      %s38 = scalar_select %p35, %s36, %s37
      %p41 = pneg %p35
      %p42 = scmp.eq.s32.totalorder %s26, 1
      %p43 = por %p41, %p42
      %p44 = scmp.ne.s32.totalorder %s36, %s39
      %p45 = scmp.eq.s32.totalorder %s26, 0
      %p46 = por %p44, %p45
      %p47 = scmp.ne.s32.totalorder %s36, %s39
      %p48 = scmp.eq.s32.totalorder %s31, 1
      %p49 = por %p47, %p48
      %p50 = scmp.ne.s32.totalorder %s39, %s40
      %p51 = scmp.eq.s32.totalorder %s31, 0
      %p52 = por %p50, %p51
      %p53 = scmp.ne.s32.totalorder %s39, %s40
      %p54 = scmp.eq.s32.totalorder %s32, 1
      %p55 = por %p53, %p54
      %p57 = scmp.ne.s32.totalorder %s40, %s56
      %p58 = scmp.eq.s32.totalorder %s32, 0
      %p59 = por %p57, %p58
      %s61 = sadd.s32 %s60, 1
      %p64 = scmp.eq.s32.totalorder %s26, 1
      %p65 = scmp.ne.s32.totalorder %s60, %s62
      %p66 = scmp.eq.s32.totalorder %s26, 0
      %p67 = por %p65, %p66
      %p68 = scmp.ne.s32.totalorder %s60, %s62
      %p69 = scmp.eq.s32.totalorder %s31, 1
      %p70 = por %p68, %p69
      %p71 = scmp.ne.s32.totalorder %s62, %s63
      %p72 = scmp.eq.s32.totalorder %s31, 0
      %p73 = por %p71, %p72
      %p74 = scmp.ne.s32.totalorder %s62, %s63
      %p75 = scmp.eq.s32.totalorder %s32, 1
      %p76 = por %p74, %p75
      %p78 = scmp.ne.s32.totalorder %s63, %s77
      %p79 = scmp.eq.s32.totalorder %s32, 0
      %p80 = por %p78, %p79
      %s82 = sadd.s32 %s81, 1
      %p85 = scmp.eq.s32.totalorder %s26, 1
      %p86 = scmp.ne.s32.totalorder %s81, %s83
      %p87 = scmp.eq.s32.totalorder %s26, 0
      %p88 = por %p86, %p87
      %p89 = scmp.ne.s32.totalorder %s81, %s83
      %p90 = scmp.eq.s32.totalorder %s31, 1
      %p91 = por %p89, %p90
      %p92 = scmp.ne.s32.totalorder %s83, %s84
      %p93 = scmp.eq.s32.totalorder %s31, 0
      %p94 = por %p92, %p93
      %p95 = scmp.ne.s32.totalorder %s83, %s84
      %p96 = scmp.eq.s32.totalorder %s32, 1
      %p97 = por %p95, %p96
      %p99 = scmp.ne.s32.totalorder %s84, %s98
      %p100 = scmp.eq.s32.totalorder %s32, 0
      %p101 = por %p99, %p100
      %s102 = ssub.s32 %s26, %s33
      %p103 = scmp.eq.s32.totalorder %s102, 0
      %s105 = sadd.s32 %s104, 1
      %s106 = scalar_select %p103, %s104, %s105
      %p109 = pneg %p103
      %p110 = scmp.eq.s32.totalorder %s26, 1
      %p111 = por %p109, %p110
      %p112 = scmp.ne.s32.totalorder %s104, %s107
      %p113 = scmp.eq.s32.totalorder %s26, 0
      %p114 = por %p112, %p113
      %p115 = scmp.ne.s32.totalorder %s104, %s107
      %p116 = scmp.eq.s32.totalorder %s31, 1
      %p117 = por %p115, %p116
      %p118 = scmp.ne.s32.totalorder %s107, %s108
      %p119 = scmp.eq.s32.totalorder %s31, 0
      %p120 = por %p118, %p119
      %p121 = scmp.ne.s32.totalorder %s107, %s108
      %p122 = scmp.eq.s32.totalorder %s32, 1
      %p123 = por %p121, %p122
      %p125 = scmp.ne.s32.totalorder %s108, %s124
      %p126 = scmp.eq.s32.totalorder %s32, 0
      %p127 = por %p125, %p126
      %s128 = ssub.s32 %s26, %s33
      %p129 = scmp.eq.s32.totalorder %s128, 0
      %s131 = sadd.s32 %s130, 1
      %s132 = scalar_select %p129, %s130, %s131
      %p135 = pneg %p129
      %p136 = scmp.eq.s32.totalorder %s26, 1
      %p137 = por %p135, %p136
      %p138 = scmp.ne.s32.totalorder %s130, %s133
      %p139 = scmp.eq.s32.totalorder %s26, 0
      %p140 = por %p138, %p139
      %p141 = scmp.ne.s32.totalorder %s130, %s133
      %p142 = scmp.eq.s32.totalorder %s31, 1
      %p143 = por %p141, %p142
      %p144 = scmp.ne.s32.totalorder %s133, %s134
      %p145 = scmp.eq.s32.totalorder %s31, 0
      %p146 = por %p144, %p145
      %p147 = scmp.ne.s32.totalorder %s133, %s134
      %p148 = scmp.eq.s32.totalorder %s32, 1
      %p149 = por %p147, %p148
      %p151 = scmp.ne.s32.totalorder %s134, %s150
      %p152 = scmp.eq.s32.totalorder %s32, 0
      %p153 = por %p151, %p152
      %s154 = ssub.s32 %s26, %s33
      %p155 = scmp.eq.s32.totalorder %s154, 0
      %s157 = sadd.s32 %s156, 1
      %s158 = scalar_select %p155, %s156, %s157
      %p161 = pneg %p155
      %p162 = scmp.eq.s32.totalorder %s26, 1
      %p163 = por %p161, %p162
      %p164 = scmp.ne.s32.totalorder %s156, %s159
      %p165 = scmp.eq.s32.totalorder %s26, 0
      %p166 = por %p164, %p165
      %p167 = scmp.ne.s32.totalorder %s156, %s159
      %p168 = scmp.eq.s32.totalorder %s31, 1
      %p169 = por %p167, %p168
      %p170 = scmp.ne.s32.totalorder %s159, %s160
      %p171 = scmp.eq.s32.totalorder %s31, 0
      %p172 = por %p170, %p171
      %p173 = scmp.ne.s32.totalorder %s159, %s160
      %p174 = scmp.eq.s32.totalorder %s32, 1
      %p175 = por %p173, %p174
      %p177 = scmp.ne.s32.totalorder %s160, %s176
      %p178 = scmp.eq.s32.totalorder %s32, 0
      %p179 = por %p177, %p178
      %s180 = ssub.s32 %s26, %s33
      %p181 = scmp.eq.s32.totalorder %s180, 0
      %s183 = sadd.s32 %s182, 1
      %s184 = scalar_select %p181, %s182, %s183
      %p187 = pneg %p181
      %p188 = scmp.eq.s32.totalorder %s26, 1
      %p189 = por %p187, %p188
      %p190 = scmp.ne.s32.totalorder %s182, %s185
      %p191 = scmp.eq.s32.totalorder %s26, 0
      %p192 = por %p190, %p191
      %p193 = scmp.ne.s32.totalorder %s182, %s185
      %p194 = scmp.eq.s32.totalorder %s31, 1
      %p195 = por %p193, %p194
      %p196 = scmp.ne.s32.totalorder %s185, %s186
      %p197 = scmp.eq.s32.totalorder %s31, 0
      %p198 = por %p196, %p197
      %p199 = scmp.ne.s32.totalorder %s185, %s186
      %p200 = scmp.eq.s32.totalorder %s32, 1
      %p201 = por %p199, %p200
      %p203 = scmp.ne.s32.totalorder %s186, %s202
      %p204 = scmp.eq.s32.totalorder %s32, 0
      %p205 = por %p203, %p204
      %p206 = scmp.le.s32.totalorder 1, %s26
      %p207 = scmp.lt.s32.totalorder %s26, 3
      %p208 = pnand %p206, %p207
      %p209 = pneg %p208
      // Predicated region
      $region9: #{tpu_custom_call.1} parent=5 // pred_check
        _
      $region10: #{tpu_custom_call.1} parent=5 // pred_check_branch
        %211 = sbr.rel (%p208) target = $region12
      $region11: #{tpu_custom_call.1} parent=5 // pred_region
        %s212 = ssub.s32 %s26, 1
        // Predicated region
        $region13: #{tpu_custom_call.1} parent=11 // pred_check
          %p213 = pneg %p73
        $region14: #{tpu_custom_call.1} parent=11 // pred_check_branch
          %215 = sbr.rel (%p213) target = $region16
        $region15: #{tpu_custom_call.1} parent=11 // pred_region
          %217 = vsyncadd [#allocation6], 0
          %s218 = sshll.u32 %s1, 4
          %s219 = int_to_ptr.hbm [resolvable:$true] %s218
          %s220 = sshll.u32 [#allocation5], 4
          %s221 = int_to_ptr.vmem [resolvable:$true] %s220
          %226 = dma.hbm_to_vmem [thread:$0]  %s219, 4608, %s221, [#allocation6], 64, 64, 4
        $region16: #{tpu_custom_call.1} parent=11 // pred_fallthru
          _
        // Predicated region
        $region17: #{tpu_custom_call.1} parent=11 // pred_check
          %p227 = pneg %p94
        $region18: #{tpu_custom_call.1} parent=11 // pred_check_branch
          %229 = sbr.rel (%p227) target = $region20
        $region19: #{tpu_custom_call.1} parent=11 // pred_region
          %231 = vsyncadd [#allocation6], 0
          %s232 = sshll.u32 %s2, 4
          %s233 = int_to_ptr.hbm [resolvable:$true] %s232
          %s234 = sshll.u32 [#allocation7], 4
          %s235 = int_to_ptr.vmem [resolvable:$true] %s234
          %240 = dma.hbm_to_vmem [thread:$0]  %s233, 512, %s235, [#allocation6], 64, 64, 4
        $region20: #{tpu_custom_call.1} parent=11 // pred_fallthru
          _
      $region12: #{tpu_custom_call.1} parent=5 // pred_fallthru
        _
      %p241 = scmp.lt.s32.totalorder %s26, 2
      // Predicated region
      $region21: #{tpu_custom_call.1} parent=5 // pred_check
        %p242 = pneg %p241
      $region22: #{tpu_custom_call.1} parent=5 // pred_check_branch
        %244 = sbr.rel (%p242) target = $region24
      $region23: #{tpu_custom_call.1} parent=5 // pred_region
        // Predicated region
        $region25: #{tpu_custom_call.1} parent=23 // pred_check
          %p245 = pneg %p46
        $region26: #{tpu_custom_call.1} parent=23 // pred_check_branch
          %247 = sbr.rel (%p245) target = $region28
        $region27: #{tpu_custom_call.1} parent=23 // pred_region
          %s248 = sand.u32 %s36, 1
          %s249 = scalar_lea.sflag [#allocation3], %s248
          %s250 = sand.u32 %s36, 1
          %s251 = smul.addr %s250, 16
          %s252 = scalar_lea.vmem [#allocation2], %s251
          %254 = vsyncadd %s249, 0
          %s255 = smul.addr %s26, 2
          %s256 = smul.addr %s255, 8
          %s257 = scalar_lea.hbm %s0, %s256
          %s258 = sshll.u32 %s257, 4
          %s259 = int_to_ptr.hbm [resolvable:$true] %s258
          %s260 = sshll.u32 %s252, 4
          %s261 = int_to_ptr.vmem [resolvable:$true] %s260
          %266 = dma.hbm_to_vmem [thread:$0]  %s259, 256, %s261, %s249, 128, 128, 8
        $region28: #{tpu_custom_call.1} parent=23 // pred_fallthru
          _
      $region24: #{tpu_custom_call.1} parent=5 // pred_fallthru
        _
      %p267 = scmp.le.s32.totalorder 1, %s26
      %p268 = scmp.lt.s32.totalorder %s26, 3
      %p269 = pnand %p267, %p268
      %p270 = pneg %p269
      // Predicated region
      $region29: #{tpu_custom_call.1} parent=5 // pred_check
        _
      $region30: #{tpu_custom_call.1} parent=5 // pred_check_branch
        %272 = sbr.rel (%p269) target = $region32
      $region31: #{tpu_custom_call.1} parent=5 // pred_region
        %s273 = ssub.s32 %s26, 1
        %s274 = sand.u32 %s39, 1
        %s275 = scalar_lea.sflag [#allocation3], %s274
        %s276 = sand.u32 %s39, 1
        %s277 = smul.addr %s276, 16
        %s278 = scalar_lea.vmem [#allocation2], %s277
        // Predicated region
        $region33: #{tpu_custom_call.1} parent=31 // pred_check
          %p279 = pneg %p52
        $region34: #{tpu_custom_call.1} parent=31 // pred_check_branch
          %281 = sbr.rel (%p279) target = $region36
        $region35: #{tpu_custom_call.1} parent=31 // pred_region
          %283 = dma.done %s275, 256
        $region36: #{tpu_custom_call.1} parent=31 // pred_fallthru
          _
        // Predicated region
        $region37: #{tpu_custom_call.1} parent=31 // pred_check
          %p284 = pneg %p73
        $region38: #{tpu_custom_call.1} parent=31 // pred_check_branch
          %286 = sbr.rel (%p284) target = $region40
        $region39: #{tpu_custom_call.1} parent=31 // pred_region
          %288 = dma.done [#allocation6], 4608
        $region40: #{tpu_custom_call.1} parent=31 // pred_fallthru
          _
        // Predicated region
        $region41: #{tpu_custom_call.1} parent=31 // pred_check
          %p289 = pneg %p94
        $region42: #{tpu_custom_call.1} parent=31 // pred_check_branch
          %291 = sbr.rel (%p289) target = $region44
        $region43: #{tpu_custom_call.1} parent=31 // pred_region
          %293 = dma.done [#allocation6], 512
        $region44: #{tpu_custom_call.1} parent=31 // pred_fallthru
          _
        %s294 = sand.u32 %s39, 1
        %s295 = scalar_lea.sflag [#allocation3], %s294
        %s296 = sand.u32 %s39, 1
        %s297 = smul.addr %s296, 16
        %s298 = scalar_lea.vmem [#allocation2], %s297
        %p299 = pneg %p52
        %p300 = pneg %p49
        %p301 = pneg %p73
        %p302 = pneg %p70
        %p303 = pneg %p94
        %p304 = pneg %p91
        %p305 = pneg %p120
        %p306 = pneg %p117
        %s307 = sand.u32 %s107, 1
        %s308 = scalar_lea.sflag [#allocation4], %s307
        %s309 = sand.u32 %s107, 1
        %s310 = smul.addr %s309, 16
        %s311 = scalar_lea.vmem [#allocation8], %s310
        %p312 = pneg %p146
        %p313 = pneg %p143
        %s314 = sand.u32 %s31, 1
        %s315 = scalar_lea.sflag [#allocation10], %s314
        %s316 = sand.u32 %s133, 1
        %s317 = smul.addr %s316, 16
        %s318 = scalar_lea.vmem [#allocation9], %s317
        %p319 = pneg %p172
        %p320 = pneg %p169
        %s321 = sand.u32 %s31, 1
        %s322 = scalar_lea.sflag [#allocation10], %s321
        %s323 = sand.u32 %s159, 1
        %s324 = smul.addr %s323, 2
        %s325 = scalar_lea.vmem [#allocation11], %s324
        %p326 = pneg %p198
        %p327 = pneg %p195
        %s328 = sand.u32 %s185, 1
        %s329 = scalar_lea.sflag [#allocation13], %s328
        %s330 = sand.u32 %s185, 1
        %s331 = smul.addr %s330, 2
        %s332 = scalar_lea.vmem [#allocation12], %s331
        %v334 = vld [vmem:[%s278] sm:$0xff]
        %v335 = vld [vmem:[%s278 + $0x8] sm:$0xff]
        %338 = vrot.lane.b32.xlu0 %v334, 4
        %v339 = vpop.permute.xlu0 %338
        %340 = vrot.lane.b32.xlu0 %v335, 4
        %v341 = vpop.permute.xlu0 %340
        %vm344 = vcmask 31744
        %v345 = vsel %vm344, 0.0, %v339
        %v346 = vsel %vm344, 0.0, %v341
        %vm347 = vcmask 556032
        %v348 = vsel %vm347, %v345, 0.0
        %v349 = vsel %vm347, %v346, 0.0
        %vm352 = vcmask 1040384
        %v353 = vrot.slane %v348, 7
        %v354 = vrot.slane %v349, 7
        %v355 = vsel %vm352, %v353, %v354
        %v359 = vsel %vm352, 0.0, %v353
        %v360 = vsel %vm352, %v354, 0.0
        %v361 = vpack.c.bf16 %v355, %v359
        %v362 = vld [vmem:[#allocation5] sm:$0xf]
        %v363 = vld [vmem:[#allocation5 + $0x4] sm:$0xf]
        %v364 = vld [vmem:[#allocation5 + $0x8] sm:$0xf]
        %v365 = vld [vmem:[#allocation5 + $0xc] sm:$0xf]
        %v366 = vld [vmem:[#allocation5 + $0x10] sm:$0xf]
        %v367 = vld [vmem:[#allocation5 + $0x14] sm:$0xf]
        %v368 = vld [vmem:[#allocation5 + $0x18] sm:$0xf]
        %v369 = vld [vmem:[#allocation5 + $0x1c] sm:$0xf]
        %s370 = scalar_lea.vmem [#allocation5], 32
        %v371 = vld [vmem:[%s370] sm:$0xf]
        %v372 = vld [vmem:[%s370 + $0x4] sm:$0xf]
        %v373 = vld [vmem:[%s370 + $0x8] sm:$0xf]
        %v374 = vld [vmem:[%s370 + $0xc] sm:$0xf]
        %v375 = vld [vmem:[%s370 + $0x10] sm:$0xf]
        %v376 = vld [vmem:[%s370 + $0x14] sm:$0xf]
        %v377 = vld [vmem:[%s370 + $0x18] sm:$0xf]
        %v378 = vld [vmem:[%s370 + $0x1c] sm:$0xf]
        %380 = vrot.lane.b32.xlu0 %v361, 124
        %v381 = vpop.permute.xlu0 %380
        %v390 = vunpack.c.l.b16 %v371
        %v391 = vunpack.c.l.b16 %v372
        %v392 = vunpack.c.l.b16 %v373
        %v393 = vunpack.c.l.b16 %v374
        %v394 = vunpack.c.l.b16 %v375
        %v395 = vunpack.c.l.b16 %v376
        %v396 = vunpack.c.l.b16 %v377
        %v397 = vunpack.c.l.b16 %v378
        %v398 = vpack.c.b16 %v391, %v390
        %v399 = vpack.c.b16 %v393, %v392
        %v400 = vpack.c.b16 %v395, %v394
        %v401 = vpack.c.b16 %v397, %v396
        %vm406 = vcmask 523264
        %v408 = vsel %vm406, %v381, 0
        %410 = vmatpush.bf16.msra.mxu0 0
        %411 = vmatpush.bf16.msra.mxu0 0
        %412 = vmatpush.bf16.msra.mxu0 0
        %413 = vmatpush.bf16.msra.mxu0 0
        %414 = vmatpush.bf16.msra.mxu0 %v401
        %415 = vmatpush.bf16.msra.mxu0 %v400
        %416 = vmatpush.bf16.msra.mxu0 %v399
        %417 = vmatpush.bf16.msra.mxu0 %v398
        %418 = vmatmul.bf16.gmra.mxu0 %v408
        %v419 = vpop.f32.mrf.mxu0
        %v420 = vadd.f32 0.0, %v419
        %v421 = vpop.f32.mrf.mxu0
        %v422 = vadd.f32 0.0, %v421
        %423 = vdwg.mxu0
        %v432 = vunpack.c.l.b16 %v362
        %v433 = vunpack.c.l.b16 %v363
        %v434 = vunpack.c.l.b16 %v364
        %v435 = vunpack.c.l.b16 %v365
        %v436 = vunpack.c.l.b16 %v366
        %v437 = vunpack.c.l.b16 %v367
        %v438 = vunpack.c.l.b16 %v368
        %v439 = vunpack.c.l.b16 %v369
        %v440 = vpack.c.b16 %v433, %v432
        %v441 = vpack.c.b16 %v435, %v434
        %v442 = vpack.c.b16 %v437, %v436
        %v443 = vpack.c.b16 %v439, %v438
        %v449 = vsel %vm406, %v361, 0
        %451 = vmatpush.bf16.msra.mxu0 0
        %452 = vmatpush.bf16.msra.mxu0 0
        %453 = vmatpush.bf16.msra.mxu0 0
        %454 = vmatpush.bf16.msra.mxu0 0
        %455 = vmatpush.bf16.msra.mxu0 %v443
        %456 = vmatpush.bf16.msra.mxu0 %v442
        %457 = vmatpush.bf16.msra.mxu0 %v441
        %458 = vmatpush.bf16.msra.mxu0 %v440
        %459 = vmatmul.bf16.gmra.mxu0 %v449
        %v460 = vpop.f32.mrf.mxu0
        %v461 = vadd.f32 %v420, %v460
        %v462 = vpop.f32.mrf.mxu0
        %v463 = vadd.f32 %v422, %v462
        %464 = vdwg.mxu0
        %s465 = scalar_lea.vmem [#allocation5], 64
        %v466 = vld [vmem:[%s465] sm:$0xf]
        %v467 = vld [vmem:[%s465 + $0x4] sm:$0xf]
        %v468 = vld [vmem:[%s465 + $0x8] sm:$0xf]
        %v469 = vld [vmem:[%s465 + $0xc] sm:$0xf]
        %v470 = vld [vmem:[%s465 + $0x10] sm:$0xf]
        %v471 = vld [vmem:[%s465 + $0x14] sm:$0xf]
        %v472 = vld [vmem:[%s465 + $0x18] sm:$0xf]
        %v473 = vld [vmem:[%s465 + $0x1c] sm:$0xf]
        %474 = vrot.lane.b32.xlu0 %v361, 120
        %v475 = vpop.permute.xlu0 %474
        %v484 = vunpack.c.l.b16 %v466
        %v485 = vunpack.c.l.b16 %v467
        %v486 = vunpack.c.l.b16 %v468
        %v487 = vunpack.c.l.b16 %v469
        %v488 = vunpack.c.l.b16 %v470
        %v489 = vunpack.c.l.b16 %v471
        %v490 = vunpack.c.l.b16 %v472
        %v491 = vunpack.c.l.b16 %v473
        %v492 = vpack.c.b16 %v485, %v484
        %v493 = vpack.c.b16 %v487, %v486
        %v494 = vpack.c.b16 %v489, %v488
        %v495 = vpack.c.b16 %v491, %v490
        %v501 = vsel %vm406, %v475, 0
        %503 = vmatpush.bf16.msra.mxu0 0
        %504 = vmatpush.bf16.msra.mxu0 0
        %505 = vmatpush.bf16.msra.mxu0 0
        %506 = vmatpush.bf16.msra.mxu0 0
        %507 = vmatpush.bf16.msra.mxu0 %v495
        %508 = vmatpush.bf16.msra.mxu0 %v494
        %509 = vmatpush.bf16.msra.mxu0 %v493
        %510 = vmatpush.bf16.msra.mxu0 %v492
        %511 = vmatmul.bf16.gmra.mxu0 %v501
        %v512 = vpop.f32.mrf.mxu0
        %v513 = vadd.f32 0.0, %v512
        %v514 = vpop.f32.mrf.mxu0
        %v515 = vadd.f32 0.0, %v514
        %516 = vdwg.mxu0
        %v517 = vadd.f32 %v461, %v513
        %v518 = vadd.f32 %v463, %v515
        %v519 = vpack.c.bf16 %v360, %v360
        %s520 = scalar_lea.vmem [#allocation5], 96
        %v521 = vld [vmem:[%s520] sm:$0xf]
        %v522 = vld [vmem:[%s520 + $0x4] sm:$0xf]
        %v523 = vld [vmem:[%s520 + $0x8] sm:$0xf]
        %v524 = vld [vmem:[%s520 + $0xc] sm:$0xf]
        %v525 = vld [vmem:[%s520 + $0x10] sm:$0xf]
        %v526 = vld [vmem:[%s520 + $0x14] sm:$0xf]
        %v527 = vld [vmem:[%s520 + $0x18] sm:$0xf]
        %v528 = vld [vmem:[%s520 + $0x1c] sm:$0xf]
        %vm529 = vsmask.f32 7424
        %v530 = vshrl.u32 %v361, 16
        %v532 = vshll.u32 %v361, 16
        %v534 = vrot.slane %v532, 1
        %v535 = vor.u32 %v530, %v534
        %v537 = vshll.u32 %v519, 16
        %v539 = vrot.slane %v537, 1
        %v540 = vsel %vm529, %v535, %v539
        %v549 = vunpack.c.l.b16 %v521
        %v550 = vunpack.c.l.b16 %v522
        %v551 = vunpack.c.l.b16 %v523
        %v552 = vunpack.c.l.b16 %v524
        %v553 = vunpack.c.l.b16 %v525
        %v554 = vunpack.c.l.b16 %v526
        %v555 = vunpack.c.l.b16 %v527
        %v556 = vunpack.c.l.b16 %v528
        %v557 = vpack.c.b16 %v550, %v549
        %v558 = vpack.c.b16 %v552, %v551
        %v559 = vpack.c.b16 %v554, %v553
        %v560 = vpack.c.b16 %v556, %v555
        %v566 = vsel %vm406, %v540, 0
        %568 = vmatpush.bf16.msra.mxu0 0
        %569 = vmatpush.bf16.msra.mxu0 0
        %570 = vmatpush.bf16.msra.mxu0 0
        %571 = vmatpush.bf16.msra.mxu0 0
        %572 = vmatpush.bf16.msra.mxu0 %v560
        %573 = vmatpush.bf16.msra.mxu0 %v559
        %574 = vmatpush.bf16.msra.mxu0 %v558
        %575 = vmatpush.bf16.msra.mxu0 %v557
        %576 = vmatmul.bf16.gmra.mxu0 %v566
        %v577 = vpop.f32.mrf.mxu0
        %v578 = vadd.f32 0.0, %v577
        %v579 = vpop.f32.mrf.mxu0
        %v580 = vadd.f32 0.0, %v579
        %581 = vdwg.mxu0
        %v582 = vadd.f32 %v517, %v578
        %v583 = vadd.f32 %v518, %v580
        %s584 = scalar_lea.vmem [#allocation5], 128
        %v585 = vld [vmem:[%s584] sm:$0xf]
        %v586 = vld [vmem:[%s584 + $0x4] sm:$0xf]
        %v587 = vld [vmem:[%s584 + $0x8] sm:$0xf]
        %v588 = vld [vmem:[%s584 + $0xc] sm:$0xf]
        %v589 = vld [vmem:[%s584 + $0x10] sm:$0xf]
        %v590 = vld [vmem:[%s584 + $0x14] sm:$0xf]
        %v591 = vld [vmem:[%s584 + $0x18] sm:$0xf]
        %v592 = vld [vmem:[%s584 + $0x1c] sm:$0xf]
        %593 = vrot.lane.b32.xlu0 %v540, 124
        %v594 = vpop.permute.xlu0 %593
        %v603 = vunpack.c.l.b16 %v585
        %v604 = vunpack.c.l.b16 %v586
        %v605 = vunpack.c.l.b16 %v587
        %v606 = vunpack.c.l.b16 %v588
        %v607 = vunpack.c.l.b16 %v589
        %v608 = vunpack.c.l.b16 %v590
        %v609 = vunpack.c.l.b16 %v591
        %v610 = vunpack.c.l.b16 %v592
        %v611 = vpack.c.b16 %v604, %v603
        %v612 = vpack.c.b16 %v606, %v605
        %v613 = vpack.c.b16 %v608, %v607
        %v614 = vpack.c.b16 %v610, %v609
        %v620 = vsel %vm406, %v594, 0
        %622 = vmatpush.bf16.msra.mxu0 0
        %623 = vmatpush.bf16.msra.mxu0 0
        %624 = vmatpush.bf16.msra.mxu0 0
        %625 = vmatpush.bf16.msra.mxu0 0
        %626 = vmatpush.bf16.msra.mxu0 %v614
        %627 = vmatpush.bf16.msra.mxu0 %v613
        %628 = vmatpush.bf16.msra.mxu0 %v612
        %629 = vmatpush.bf16.msra.mxu0 %v611
        %630 = vmatmul.bf16.gmra.mxu0 %v620
        %v631 = vpop.f32.mrf.mxu0
        %v632 = vadd.f32 0.0, %v631
        %v633 = vpop.f32.mrf.mxu0
        %v634 = vadd.f32 0.0, %v633
        %635 = vdwg.mxu0
        %v636 = vadd.f32 %v582, %v632
        %v637 = vadd.f32 %v583, %v634
        %s638 = scalar_lea.vmem [#allocation5], 160
        %v639 = vld [vmem:[%s638] sm:$0xf]
        %v640 = vld [vmem:[%s638 + $0x4] sm:$0xf]
        %v641 = vld [vmem:[%s638 + $0x8] sm:$0xf]
        %v642 = vld [vmem:[%s638 + $0xc] sm:$0xf]
        %v643 = vld [vmem:[%s638 + $0x10] sm:$0xf]
        %v644 = vld [vmem:[%s638 + $0x14] sm:$0xf]
        %v645 = vld [vmem:[%s638 + $0x18] sm:$0xf]
        %v646 = vld [vmem:[%s638 + $0x1c] sm:$0xf]
        %647 = vrot.lane.b32.xlu0 %v540, 120
        %v648 = vpop.permute.xlu0 %647
        %v657 = vunpack.c.l.b16 %v639
        %v658 = vunpack.c.l.b16 %v640
        %v659 = vunpack.c.l.b16 %v641
        %v660 = vunpack.c.l.b16 %v642
        %v661 = vunpack.c.l.b16 %v643
        %v662 = vunpack.c.l.b16 %v644
        %v663 = vunpack.c.l.b16 %v645
        %v664 = vunpack.c.l.b16 %v646
        %v665 = vpack.c.b16 %v658, %v657
        %v666 = vpack.c.b16 %v660, %v659
        %v667 = vpack.c.b16 %v662, %v661
        %v668 = vpack.c.b16 %v664, %v663
        %v674 = vsel %vm406, %v648, 0
        %676 = vmatpush.bf16.msra.mxu0 0
        %677 = vmatpush.bf16.msra.mxu0 0
        %678 = vmatpush.bf16.msra.mxu0 0
        %679 = vmatpush.bf16.msra.mxu0 0
        %680 = vmatpush.bf16.msra.mxu0 %v668
        %681 = vmatpush.bf16.msra.mxu0 %v667
        %682 = vmatpush.bf16.msra.mxu0 %v666
        %683 = vmatpush.bf16.msra.mxu0 %v665
        %684 = vmatmul.bf16.gmra.mxu0 %v674
        %v685 = vpop.f32.mrf.mxu0
        %v686 = vadd.f32 0.0, %v685
        %v687 = vpop.f32.mrf.mxu0
        %v688 = vadd.f32 0.0, %v687
        %689 = vdwg.mxu0
        %v690 = vadd.f32 %v636, %v686
        %v691 = vadd.f32 %v637, %v688
        %s692 = scalar_lea.vmem [#allocation5], 192
        %v693 = vld [vmem:[%s692] sm:$0xf]
        %v694 = vld [vmem:[%s692 + $0x4] sm:$0xf]
        %v695 = vld [vmem:[%s692 + $0x8] sm:$0xf]
        %v696 = vld [vmem:[%s692 + $0xc] sm:$0xf]
        %v697 = vld [vmem:[%s692 + $0x10] sm:$0xf]
        %v698 = vld [vmem:[%s692 + $0x14] sm:$0xf]
        %v699 = vld [vmem:[%s692 + $0x18] sm:$0xf]
        %v700 = vld [vmem:[%s692 + $0x1c] sm:$0xf]
        %vm702 = vcmask 1046528
        %v703 = vrot.slane %v361, 1
        %v704 = vrot.slane %v519, 1
        %v705 = vsel %vm702, %v703, %v704
        %v714 = vunpack.c.l.b16 %v693
        %v715 = vunpack.c.l.b16 %v694
        %v716 = vunpack.c.l.b16 %v695
        %v717 = vunpack.c.l.b16 %v696
        %v718 = vunpack.c.l.b16 %v697
        %v719 = vunpack.c.l.b16 %v698
        %v720 = vunpack.c.l.b16 %v699
        %v721 = vunpack.c.l.b16 %v700
        %v722 = vpack.c.b16 %v715, %v714
        %v723 = vpack.c.b16 %v717, %v716
        %v724 = vpack.c.b16 %v719, %v718
        %v725 = vpack.c.b16 %v721, %v720
        %v731 = vsel %vm406, %v705, 0
        %733 = vmatpush.bf16.msra.mxu0 0
        %734 = vmatpush.bf16.msra.mxu0 0
        %735 = vmatpush.bf16.msra.mxu0 0
        %736 = vmatpush.bf16.msra.mxu0 0
        %737 = vmatpush.bf16.msra.mxu0 %v725
        %738 = vmatpush.bf16.msra.mxu0 %v724
        %739 = vmatpush.bf16.msra.mxu0 %v723
        %740 = vmatpush.bf16.msra.mxu0 %v722
        %741 = vmatmul.bf16.gmra.mxu0 %v731
        %v742 = vpop.f32.mrf.mxu0
        %v743 = vadd.f32 0.0, %v742
        %v744 = vpop.f32.mrf.mxu0
        %v745 = vadd.f32 0.0, %v744
        %746 = vdwg.mxu0
        %v747 = vadd.f32 %v690, %v743
        %v748 = vadd.f32 %v691, %v745
        %s749 = scalar_lea.vmem [#allocation5], 224
        %v750 = vld [vmem:[%s749] sm:$0xf]
        %v751 = vld [vmem:[%s749 + $0x4] sm:$0xf]
        %v752 = vld [vmem:[%s749 + $0x8] sm:$0xf]
        %v753 = vld [vmem:[%s749 + $0xc] sm:$0xf]
        %v754 = vld [vmem:[%s749 + $0x10] sm:$0xf]
        %v755 = vld [vmem:[%s749 + $0x14] sm:$0xf]
        %v756 = vld [vmem:[%s749 + $0x18] sm:$0xf]
        %v757 = vld [vmem:[%s749 + $0x1c] sm:$0xf]
        %758 = vrot.lane.b32.xlu0 %v705, 124
        %v759 = vpop.permute.xlu0 %758
        %v768 = vunpack.c.l.b16 %v750
        %v769 = vunpack.c.l.b16 %v751
        %v770 = vunpack.c.l.b16 %v752
        %v771 = vunpack.c.l.b16 %v753
        %v772 = vunpack.c.l.b16 %v754
        %v773 = vunpack.c.l.b16 %v755
        %v774 = vunpack.c.l.b16 %v756
        %v775 = vunpack.c.l.b16 %v757
        %v776 = vpack.c.b16 %v769, %v768
        %v777 = vpack.c.b16 %v771, %v770
        %v778 = vpack.c.b16 %v773, %v772
        %v779 = vpack.c.b16 %v775, %v774
        %v785 = vsel %vm406, %v759, 0
        %787 = vmatpush.bf16.msra.mxu0 0
        %788 = vmatpush.bf16.msra.mxu0 0
        %789 = vmatpush.bf16.msra.mxu0 0
        %790 = vmatpush.bf16.msra.mxu0 0
        %791 = vmatpush.bf16.msra.mxu0 %v779
        %792 = vmatpush.bf16.msra.mxu0 %v778
        %793 = vmatpush.bf16.msra.mxu0 %v777
        %794 = vmatpush.bf16.msra.mxu0 %v776
        %795 = vmatmul.bf16.gmra.mxu0 %v785
        %v796 = vpop.f32.mrf.mxu0
        %v797 = vadd.f32 0.0, %v796
        %v798 = vpop.f32.mrf.mxu0
        %v799 = vadd.f32 0.0, %v798
        %800 = vdwg.mxu0
        %v801 = vadd.f32 %v747, %v797
        %v802 = vadd.f32 %v748, %v799
        %s803 = scalar_lea.vmem [#allocation5], 256
        %v804 = vld [vmem:[%s803] sm:$0xf]
        %v805 = vld [vmem:[%s803 + $0x4] sm:$0xf]
        %v806 = vld [vmem:[%s803 + $0x8] sm:$0xf]
        %v807 = vld [vmem:[%s803 + $0xc] sm:$0xf]
        %v808 = vld [vmem:[%s803 + $0x10] sm:$0xf]
        %v809 = vld [vmem:[%s803 + $0x14] sm:$0xf]
        %v810 = vld [vmem:[%s803 + $0x18] sm:$0xf]
        %v811 = vld [vmem:[%s803 + $0x1c] sm:$0xf]
        %812 = vrot.lane.b32.xlu0 %v705, 120
        %v813 = vpop.permute.xlu0 %812
        %v822 = vunpack.c.l.b16 %v804
        %v823 = vunpack.c.l.b16 %v805
        %v824 = vunpack.c.l.b16 %v806
        %v825 = vunpack.c.l.b16 %v807
        %v826 = vunpack.c.l.b16 %v808
        %v827 = vunpack.c.l.b16 %v809
        %v828 = vunpack.c.l.b16 %v810
        %v829 = vunpack.c.l.b16 %v811
        %v830 = vpack.c.b16 %v823, %v822
        %v831 = vpack.c.b16 %v825, %v824
        %v832 = vpack.c.b16 %v827, %v826
        %v833 = vpack.c.b16 %v829, %v828
        %v839 = vsel %vm406, %v813, 0
        %841 = vmatpush.bf16.msra.mxu0 0
        %842 = vmatpush.bf16.msra.mxu0 0
        %843 = vmatpush.bf16.msra.mxu0 0
        %844 = vmatpush.bf16.msra.mxu0 0
        %845 = vmatpush.bf16.msra.mxu0 %v833
        %846 = vmatpush.bf16.msra.mxu0 %v832
        %847 = vmatpush.bf16.msra.mxu0 %v831
        %848 = vmatpush.bf16.msra.mxu0 %v830
        %849 = vmatmul.bf16.gmra.mxu0 %v839
        %v850 = vpop.f32.mrf.mxu0
        %v851 = vadd.f32 0.0, %v850
        %v852 = vpop.f32.mrf.mxu0
        %v853 = vadd.f32 0.0, %v852
        %854 = vdwg.mxu0
        %v855 = vadd.f32 %v801, %v851
        %v856 = vadd.f32 %v802, %v853
        %v857 = vpack.c.bf16 %v335, %v334
        %v858 = vld [vmem:[#allocation7] sm:$0xf]
        %v859 = vld [vmem:[#allocation7 + $0x4] sm:$0xf]
        %v860 = vld [vmem:[#allocation7 + $0x8] sm:$0xf]
        %v861 = vld [vmem:[#allocation7 + $0xc] sm:$0xf]
        %v862 = vld [vmem:[#allocation7 + $0x10] sm:$0xf]
        %v863 = vld [vmem:[#allocation7 + $0x14] sm:$0xf]
        %v864 = vld [vmem:[#allocation7 + $0x18] sm:$0xf]
        %v865 = vld [vmem:[#allocation7 + $0x1c] sm:$0xf]
        %v874 = vunpack.c.l.b16 %v858
        %v875 = vunpack.c.l.b16 %v859
        %v876 = vunpack.c.l.b16 %v860
        %v877 = vunpack.c.l.b16 %v861
        %v878 = vunpack.c.l.b16 %v862
        %v879 = vunpack.c.l.b16 %v863
        %v880 = vunpack.c.l.b16 %v864
        %v881 = vunpack.c.l.b16 %v865
        %v882 = vpack.c.b16 %v875, %v874
        %v883 = vpack.c.b16 %v877, %v876
        %v884 = vpack.c.b16 %v879, %v878
        %v885 = vpack.c.b16 %v881, %v880
        %v891 = vsel %vm406, %v857, 0
        %893 = vmatpush.bf16.msra.mxu0 0
        %894 = vmatpush.bf16.msra.mxu0 0
        %895 = vmatpush.bf16.msra.mxu0 0
        %896 = vmatpush.bf16.msra.mxu0 0
        %897 = vmatpush.bf16.msra.mxu0 %v885
        %898 = vmatpush.bf16.msra.mxu0 %v884
        %899 = vmatpush.bf16.msra.mxu0 %v883
        %900 = vmatpush.bf16.msra.mxu0 %v882
        %901 = vmatmul.bf16.gmra.mxu0 %v891
        %v902 = vpop.f32.mrf.mxu0
        %v903 = vadd.f32 0.0, %v902
        %v904 = vpop.f32.mrf.mxu0
        %v905 = vadd.f32 0.0, %v904
        %906 = vdwg.mxu0
        %907 = vst [vmem:[%s311] sm:$0xff] %v855
        %908 = vst [vmem:[%s311 + $0x8] sm:$0xff] %v856
        %909 = vst [vmem:[%s318] sm:$0xff] %v903
        %910 = vst [vmem:[%s318 + $0x8] sm:$0xff] %v905
        %v911 = vadd.f32 %v855, %v856
        %v912 = vrot.slane %v911, 4
        %v913 = vadd.f32 %v911, %v912
        %v914 = vrot.slane %v913, 2
        %v915 = vadd.f32 %v913, %v914
        %v916 = vrot.slane %v915, 1
        %v917 = vadd.f32 %v915, %v916
        %v918 = vmul.f32 %v855, %v855
        %v919 = vmul.f32 %v856, %v856
        %v920 = vadd.f32 %v918, %v919
        %v921 = vrot.slane %v920, 4
        %v922 = vadd.f32 %v920, %v921
        %v923 = vrot.slane %v922, 2
        %v924 = vadd.f32 %v922, %v923
        %v925 = vrot.slane %v924, 1
        %v926 = vadd.f32 %v924, %v925
        %v927 = vsel %vm352, %v917, %v926
        %928 = vst [vmem:[%s325] sm:$0x3] %v927
        %v929 = vadd.f32 %v903, %v905
        %v930 = vrot.slane %v929, 4
        %v931 = vadd.f32 %v929, %v930
        %v932 = vrot.slane %v931, 2
        %v933 = vadd.f32 %v931, %v932
        %v934 = vrot.slane %v933, 1
        %v935 = vadd.f32 %v933, %v934
        %v936 = vmul.f32 %v903, %v903
        %v937 = vmul.f32 %v905, %v905
        %v938 = vadd.f32 %v936, %v937
        %v939 = vrot.slane %v938, 4
        %v940 = vadd.f32 %v938, %v939
        %v941 = vrot.slane %v940, 2
        %v942 = vadd.f32 %v940, %v941
        %v943 = vrot.slane %v942, 1
        %v944 = vadd.f32 %v942, %v943
        %v945 = vsel %vm352, %v935, %v944
        %946 = vst [vmem:[%s332] sm:$0x3] %v945
        %s947 = sand.u32 %s107, 1
        %s948 = scalar_lea.sflag [#allocation4], %s947
        %s949 = sand.u32 %s107, 1
        %s950 = smul.addr %s949, 16
        %s951 = scalar_lea.vmem [#allocation8], %s950
        %s952 = sand.u32 %s31, 1
        %s953 = scalar_lea.sflag [#allocation10], %s952
        %s954 = sand.u32 %s133, 1
        %s955 = smul.addr %s954, 16
        %s956 = scalar_lea.vmem [#allocation9], %s955
        %s957 = sand.u32 %s31, 1
        %s958 = scalar_lea.sflag [#allocation10], %s957
        %s959 = sand.u32 %s159, 1
        %s960 = smul.addr %s959, 2
        %s961 = scalar_lea.vmem [#allocation11], %s960
        %s962 = sand.u32 %s185, 1
        %s963 = scalar_lea.sflag [#allocation13], %s962
        %s964 = sand.u32 %s185, 1
        %s965 = smul.addr %s964, 2
        %s966 = scalar_lea.vmem [#allocation12], %s965
        // Predicated region
        $region45: #{tpu_custom_call.1} parent=31 // pred_check
          %p967 = pneg %p117
        $region46: #{tpu_custom_call.1} parent=31 // pred_check_branch
          %969 = sbr.rel (%p967) target = $region48
        $region47: #{tpu_custom_call.1} parent=31 // pred_region
          %971 = vsyncadd %s948, 0
          %s972 = smul.addr %s31, 2
          %s973 = smul.addr %s972, 8
          %s974 = scalar_lea.hbm %s3, %s973
          %s975 = sshll.u32 %s951, 4
          %s976 = int_to_ptr.vmem [resolvable:$true] %s975
          %s977 = sshll.u32 %s974, 4
          %s978 = int_to_ptr.hbm [resolvable:$true] %s977
          %983 = dma.vmem_to_hbm [thread:$0]  %s976, 256, %s978, %s948, 128, 128, 8
        $region48: #{tpu_custom_call.1} parent=31 // pred_fallthru
          _
        // Predicated region
        $region49: #{tpu_custom_call.1} parent=31 // pred_check
          %p984 = pneg %p143
        $region50: #{tpu_custom_call.1} parent=31 // pred_check_branch
          %986 = sbr.rel (%p984) target = $region52
        $region51: #{tpu_custom_call.1} parent=31 // pred_region
          %988 = vsyncadd %s953, 0
          %s989 = smul.addr %s31, 2
          %s990 = smul.addr %s989, 8
          %s991 = scalar_lea.hbm %s4, %s990
          %s992 = sshll.u32 %s956, 4
          %s993 = int_to_ptr.vmem [resolvable:$true] %s992
          %s994 = sshll.u32 %s991, 4
          %s995 = int_to_ptr.hbm [resolvable:$true] %s994
          %1000 = dma.vmem_to_hbm [thread:$0]  %s993, 256, %s995, %s953, 128, 128, 8
        $region52: #{tpu_custom_call.1} parent=31 // pred_fallthru
          _
        // Predicated region
        $region53: #{tpu_custom_call.1} parent=31 // pred_check
          %p1001 = pneg %p169
        $region54: #{tpu_custom_call.1} parent=31 // pred_check_branch
          %1003 = sbr.rel (%p1001) target = $region56
        $region55: #{tpu_custom_call.1} parent=31 // pred_region
          %1005 = vsyncadd %s958, 0
          %s1006 = smul.addr %s31, 2
          %s1007 = scalar_lea.hbm %s5, %s1006
          %s1009 = sshll.u32 %s961, 4
          %s1010 = int_to_ptr.vmem [resolvable:$true] %s1009
          %s1011 = sshll.u32 %s1007, 4
          %s1012 = int_to_ptr.hbm [resolvable:$true] %s1011
          %1014 = dma.vmem_to_hbm [thread:$0]  %s1010, 32, %s1012, %s958
        $region56: #{tpu_custom_call.1} parent=31 // pred_fallthru
          _
        // Predicated region
        $region57: #{tpu_custom_call.1} parent=31 // pred_check
          %p1015 = pneg %p195
        $region58: #{tpu_custom_call.1} parent=31 // pred_check_branch
          %1017 = sbr.rel (%p1015) target = $region60
        $region59: #{tpu_custom_call.1} parent=31 // pred_region
          %1019 = vsyncadd %s963, 0
          %s1020 = smul.addr %s31, 2
          %s1021 = scalar_lea.hbm %s6, %s1020
          %s1023 = sshll.u32 %s966, 4
          %s1024 = int_to_ptr.vmem [resolvable:$true] %s1023
          %s1025 = sshll.u32 %s1021, 4
          %s1026 = int_to_ptr.hbm [resolvable:$true] %s1025
          %1028 = dma.vmem_to_hbm [thread:$0]  %s1024, 32, %s1026, %s963
        $region60: #{tpu_custom_call.1} parent=31 // pred_fallthru
          _
      $region32: #{tpu_custom_call.1} parent=5 // pred_fallthru
        _
      %p1029 = scmp.le.s32.totalorder 2, %s26
      // Predicated region
      $region61: #{tpu_custom_call.1} parent=5 // pred_check
        %p1030 = pneg %p1029
      $region62: #{tpu_custom_call.1} parent=5 // pred_check_branch
        %1032 = sbr.rel (%p1030) target = $region64
      $region63: #{tpu_custom_call.1} parent=5 // pred_region
        %s1033 = ssub.s32 %s26, 2
        // Predicated region
        $region65: #{tpu_custom_call.1} parent=63 // pred_check
          %p1034 = pneg %p123
        $region66: #{tpu_custom_call.1} parent=63 // pred_check_branch
          %1036 = sbr.rel (%p1034) target = $region68
        $region67: #{tpu_custom_call.1} parent=63 // pred_region
          %s1037 = sand.u32 %s108, 1
          %s1038 = scalar_lea.sflag [#allocation4], %s1037
          %s1039 = sand.u32 %s108, 1
          %s1040 = smul.addr %s1039, 16
          %s1041 = scalar_lea.vmem [#allocation8], %s1040
          %1043 = dma.done %s1038, 256
        $region68: #{tpu_custom_call.1} parent=63 // pred_fallthru
          _
        // Predicated region
        $region69: #{tpu_custom_call.1} parent=63 // pred_check
          %p1044 = pneg %p149
        $region70: #{tpu_custom_call.1} parent=63 // pred_check_branch
          %1046 = sbr.rel (%p1044) target = $region72
        $region71: #{tpu_custom_call.1} parent=63 // pred_region
          %s1047 = sand.u32 %s32, 1
          %s1048 = scalar_lea.sflag [#allocation10], %s1047
          %s1049 = sand.u32 %s134, 1
          %s1050 = smul.addr %s1049, 16
          %s1051 = scalar_lea.vmem [#allocation9], %s1050
          %1053 = dma.done %s1048, 256
        $region72: #{tpu_custom_call.1} parent=63 // pred_fallthru
          _
        // Predicated region
        $region73: #{tpu_custom_call.1} parent=63 // pred_check
          %p1054 = pneg %p175
        $region74: #{tpu_custom_call.1} parent=63 // pred_check_branch
          %1056 = sbr.rel (%p1054) target = $region76
        $region75: #{tpu_custom_call.1} parent=63 // pred_region
          %s1057 = sand.u32 %s32, 1
          %s1058 = scalar_lea.sflag [#allocation10], %s1057
          %s1059 = sand.u32 %s160, 1
          %s1060 = smul.addr %s1059, 2
          %s1061 = scalar_lea.vmem [#allocation11], %s1060
          %1063 = dma.done %s1058, 32
        $region76: #{tpu_custom_call.1} parent=63 // pred_fallthru
          _
        // Predicated region
        $region77: #{tpu_custom_call.1} parent=63 // pred_check
          %p1064 = pneg %p201
        $region78: #{tpu_custom_call.1} parent=63 // pred_check_branch
          %1066 = sbr.rel (%p1064) target = $region80
        $region79: #{tpu_custom_call.1} parent=63 // pred_region
          %s1067 = sand.u32 %s186, 1
          %s1068 = scalar_lea.sflag [#allocation13], %s1067
          %s1069 = sand.u32 %s186, 1
          %s1070 = smul.addr %s1069, 2
          %s1071 = scalar_lea.vmem [#allocation12], %s1070
          %1073 = dma.done %s1068, 32
        $region80: #{tpu_custom_call.1} parent=63 // pred_fallthru
          _
      $region64: #{tpu_custom_call.1} parent=5 // pred_fallthru
        _
    $region6: #{tpu_custom_call.1} parent=1 // loop_footer
      %s30 = sadd.s32 1, %s26
    $region7: #{tpu_custom_call.1} parent=1 // loop_footer_branch
      %25 = sbr.rel target = $region3
    $region8: #{tpu_custom_call.1} parent=1 // loop_exit
      _
    %1074 = vsyncpa [#allocation3], 1
    %s1075 = scalar_lea.sflag [#allocation3], 1
    %1076 = vsyncpa %s1075, 1
    %1077 = vsyncpa [#allocation6], 1
    %1078 = vsyncpa [#allocation4], 1
    %s1079 = scalar_lea.sflag [#allocation4], 1
    %1080 = vsyncpa %s1079, 1
    %1081 = vsyncpa [#allocation10], 1
    %s1082 = scalar_lea.sflag [#allocation10], 1
    %1083 = vsyncpa %s1082, 1
    %1084 = vsyncpa [#allocation13], 1
    %s1085 = scalar_lea.sflag [#allocation13], 1
    %1086 = vsyncpa %s1085, 1

</llo_original>
